<compile_context>
chip_gen: v5e
topology: v5e:2x2
jax: 0.10.0
libtpu: 0.0.40
codegen_flags: <defaults>
</compile_context>

<pallas_src>
import jax
import jax.numpy as jnp
from jax.experimental import pallas as pl
from jax.experimental.pallas import tpu as pltpu


def _hswish_kernel(x_ref, o_ref):
    # x_ref / o_ref: (tile_rows, lanes) VMEM tiles.
    x = x_ref[...]
    if not jnp.issubdtype(x.dtype, jnp.floating):
        x = x.astype(jnp.float32)
    # y = x * relu6(x + 3) / 6, divide folded into a constant multiply.
    y = x * jnp.clip(x + 3.0, 0.0, 6.0) * (1.0 / 6.0)
    o_ref[...] = y.astype(o_ref.dtype)


def hswish(x, *, target_tile_bytes=2 * 1024 * 1024, max_lanes=1024):
    """Elementwise Hswish over an arbitrarily-shaped array via a Pallas kernel."""
    orig_shape = x.shape
    dtype = x.dtype
    n = x.size
    if n == 0:
        return x

    itemsize = jnp.dtype(dtype).itemsize
    # Sublane packing of the second-minor dim: 8 (f32), 16 (bf16/f16), 32 (int8/fp8).
    sublane = max(8, 32 // itemsize)

    # --- lane (last-dim) width: widest multiple of 128 that divides n exactly,
    #     so the flatten/reshape is copy-free (no pad, no slice). ---
    lanes = 0
    cand = max(128, (max_lanes // 128) * 128)
    while cand >= 128:
        if n % cand == 0:
            lanes = cand
            break
        cand -= 128

    pad = 0
    if lanes == 0:
        # Ragged size (n % 128 != 0): minimal pad to one 128-lane row multiple.
        # TODO(synk): could be made copy-free with a masked-tail kernel if
        # ragged sizes ever matter for this op.
        lanes = 128
        pad = (-n) % lanes

    flat = jnp.ravel(x)
    if pad:
        flat = jnp.pad(flat, (0, pad))
    rows = (n + pad) // lanes
    x2d = flat.reshape(rows, lanes)  # copy-free reshape of a contiguous array

    # --- row-tile size: ~target_tile_bytes per contiguous HBM stripe ---
    cap = max(sublane, (target_tile_bytes // (lanes * itemsize)) // sublane * sublane)
    if rows > cap:
        tile_rows = cap
    elif rows >= 2 * sublane:
        # Medium input: force 2 grid steps so both v7x TensorCores get work.
        tile_rows = pl.cdiv(pl.cdiv(rows, 2), sublane) * sublane
    else:
        # Tiny input: single block equal to the full array dims (always legal).
        tile_rows = rows

    grid = (pl.cdiv(rows, tile_rows),)  # partial last block is masked by Pallas

    cost = pl.CostEstimate(
        flops=5 * n,
        transcendentals=0,
        bytes_accessed=2 * n * itemsize,
    )

    out2d = pl.pallas_call(
        _hswish_kernel,
        out_shape=jax.ShapeDtypeStruct((rows, lanes), dtype),
        grid=grid,
        in_specs=[pl.BlockSpec((tile_rows, lanes), lambda i: (i, 0))],
        out_specs=pl.BlockSpec((tile_rows, lanes), lambda i: (i, 0)),
        compiler_params=pltpu.CompilerParams(
            dimension_semantics=("parallel",),  # shards row-tiles across TCs on v7x
        ),
        cost_estimate=cost,
    )(x2d)

    if pad:
        return out2d.reshape(-1)[:n].reshape(orig_shape)
    return out2d.reshape(orig_shape)


def _hswish_ref(x):
    # Pure-JAX reference for correctness checking.
    return x * jnp.clip(x + 3.0, 0.0, 6.0) / 6.0


if __name__ == "__main__":
    key = jax.random.PRNGKey(0)
    x = jax.random.normal(key, (2, 4, 16, 16), jnp.float32) * 4.0  # spans <-3, >3

    hswish_jit = jax.jit(hswish)
    out = jax.block_until_ready(hswish_jit(x))
    ref = _hswish_ref(x)
    assert out.shape == x.shape and out.dtype == x.dtype
    assert bool(jnp.all(jnp.isfinite(out)))
    assert bool(jnp.max(jnp.abs(out - ref)) < 1e-5)

    # Ragged (non-multiple-of-128) fallback path.
    x2 = jax.random.normal(jax.random.PRNGKey(0), (3, 5, 7), jnp.float32) * 4.0
    out2 = jax.block_until_ready(jax.jit(hswish)(x2))
    assert out2.shape == x2.shape
    assert bool(jnp.max(jnp.abs(out2 - _hswish_ref(x2))) < 1e-5)

    # bf16 native-dtype path (no f32 round-trip inside the kernel).
    x3 = (jax.random.normal(jax.random.PRNGKey(0), (4, 256), jnp.float32) * 4.0
          ).astype(jnp.bfloat16)
    out3 = jax.block_until_ready(jax.jit(hswish)(x3))
    assert out3.dtype == jnp.bfloat16 and out3.shape == x3.shape
    assert bool(jnp.allclose(out3.astype(jnp.float32),
                             _hswish_ref(x3.astype(jnp.float32)),
                             rtol=2e-2, atol=2e-2))

    print("KERNEL_OK")
</pallas_src>

<mosaic_0001>
module attributes {stable_mosaic.version = 11 : i64} {
  func.func @_hswish_kernel(%arg0: i32, %arg1: memref<2x1024xf32, #tpu.memory_space<vmem>>, %arg2: memref<2x1024xf32, #tpu.memory_space<vmem>>) attributes {dimension_semantics = [#tpu.dimension_semantics<parallel>], iteration_bounds = array<i64: 1>, scalar_prefetch = 0 : i64, scratch_operands = 0 : i64, tpu.core_type = #tpu.core_type<tc>, window_params = [{transform_indices = @transform_0, window_bounds = array<i64: 2, 1024>}, {transform_indices = @transform_1, window_bounds = array<i64: 2, 1024>}]} {
    %c0 = arith.constant 0 : index
    %c0_0 = arith.constant 0 : index
    %0 = vector.load %arg1[%c0, %c0_0] : memref<2x1024xf32, #tpu.memory_space<vmem>>, vector<2x1024xf32>
    %cst = arith.constant 3.000000e+00 : f32
    %1 = vector.broadcast %cst : f32 to vector<2x1024xf32>
    %2 = arith.addf %0, %1 : vector<2x1024xf32>
    %cst_1 = arith.constant 0.000000e+00 : f32
    %cst_2 = arith.constant 6.000000e+00 : f32
    %3 = vector.broadcast %cst_1 : f32 to vector<2x1024xf32>
    %4 = arith.maximumf %3, %2 : vector<2x1024xf32>
    %5 = vector.broadcast %cst_2 : f32 to vector<2x1024xf32>
    %6 = arith.minimumf %5, %4 : vector<2x1024xf32>
    %7 = arith.mulf %0, %6 : vector<2x1024xf32>
    %cst_3 = arith.constant 0.166666672 : f32
    %8 = vector.broadcast %cst_3 : f32 to vector<2x1024xf32>
    %9 = arith.mulf %7, %8 : vector<2x1024xf32>
    %c0_4 = arith.constant 0 : index
    %c0_5 = arith.constant 0 : index
    %10 = vector.load %arg2[%c0_4, %c0_5] : memref<2x1024xf32, #tpu.memory_space<vmem>>, vector<2x1024xf32>
    tpu.vector_store %arg2[%c0_4, %c0_5], %9 {strides = array<i32>} : memref<2x1024xf32, #tpu.memory_space<vmem>>, vector<2x1024xf32>,
    return
  }
  func.func @transform_0(%arg0: i32) -> (i32, i32) {
    %c0_i32 = arith.constant 0 : i32
    %c0_i32_0 = arith.constant 0 : i32
    return %arg0, %c0_i32 : i32, i32
  }
  func.func @transform_1(%arg0: i32) -> (i32, i32) {
    %c0_i32 = arith.constant 0 : i32
    %c0_i32_0 = arith.constant 0 : i32
    return %arg0, %c0_i32 : i32, i32
  }
}

</mosaic_0001>

<llo_original>
// kernel: hswish.1
$region0: #{hswish.1}
  #allocation0 [shape = 'u32[]', space=smem, size = 0x4, offset = 0x4, fixed_abs, tag = 'smem constant byte address 0x4 - core index']
  #allocation1 [shape = 'u32[72,128]{1,0:T(1,128)}', space=vmem, size = 0x9000, scoped, tag = 'internal scratch']
  %s0 = inlined_call_operand.vmem [shape: f32[2,1024], index: 0, kind: input, shape index: {}]
  %s1 = inlined_call_operand.vmem [shape: f32[2,1024], index: 1, kind: output, shape index: {}]
  %s2 = sld [smem:[#allocation0]]
  $region14: #{hswish.1} parent=0
    _
  %s4 = ssub.s32 1, %s2
  %s5 = scalar_select 0, %s4, %s2
  // Predicated region
  $region2: #{hswish.1} parent=0 // pred_check
    _
  $region3: #{hswish.1} parent=0 // pred_check_branch
    %7 = sbr.rel (0) target = $region5
  $region4: #{hswish.1} parent=0 // pred_region
    _
  $region5: #{hswish.1} parent=0 // pred_fallthru
    _
  %v8 = vld [vmem:[%s0] sm:$0xff]
  %v9 = vld [vmem:[%s0 + $0x8] sm:$0xff]
  %v10 = vadd.f32 %v8, 3.0
  %v11 = vadd.f32 %v9, 3.0
  %v12 = vmax.f32 %v10, 0.0
  %v13 = vmax.f32 %v11, 0.0
  %v14 = vmin.f32 %v12, 6.0
  %v15 = vmin.f32 %v13, 6.0
  %v16 = vmul.f32 %v8, %v14
  %v17 = vmul.f32 %v9, %v15
  %v18 = vmul.f32 %v16, 0.16666667
  %v19 = vmul.f32 %v17, 0.16666667
  %20 = vst [vmem:[%s1] sm:$0xff] %v18
  %21 = vst [vmem:[%s1 + $0x8] sm:$0xff] %v19
  // Predicated region
  $region6: #{hswish.1} parent=0 // pred_check
    _
  $region7: #{hswish.1} parent=0 // pred_check_branch
    %23 = sbr.rel (0) target = $region9
  $region8: #{hswish.1} parent=0 // pred_region
    _
  $region9: #{hswish.1} parent=0 // pred_fallthru
    _
  // Predicated region
  $region10: #{hswish.1} parent=0 // pred_check
    _
  $region11: #{hswish.1} parent=0 // pred_check_branch
    %25 = sbr.rel (0) target = $region13
  $region12: #{hswish.1} parent=0 // pred_region
    _
  $region13: #{hswish.1} parent=0 // pred_fallthru
    _

</llo_original>
